<compile_context>
chip_gen: v7x
topology: tpu7x:2x2x1
jax: 0.10.0
libtpu: 0.0.40
codegen_flags: <defaults>
</compile_context>

<pallas_src>
import numpy as np
import jax
import jax.numpy as jnp
from jax import lax
from jax.experimental import pallas as pl
from jax.experimental.pallas import tpu as pltpu

# ----------------------------- small config ---------------------------------
B = 2             # batch
G_IN = 24         # len(input_genes)
N_SCFM = 15       # len(scfm_genes)
S = N_SCFM + 1    # scfm_seq_len (scfm_genes + 'PAD')
D = 32            # scfm encoder hidden dim
H = 64            # encoder FFN hidden
D_OUT = 16        # output_dim (!= 200 -> the feedforward Linear is applied)
D_OUT_PAD = 128   # lane-dense output padding (sliced back to D_OUT in wrapper)

# ----------------------- gene lists & index mappings ------------------------
input_genes = [f"g{i}" for i in range(G_IN)]
# partial overlap: some scfm genes present in input, some not
scfm_genes = [f"g{i}" for i in range(0, 20, 2)] + [f"x{i}" for i in range(5)]
assert len(scfm_genes) == N_SCFM

input_mapping = {g: i for i, g in enumerate(input_genes)}
scfm_genes_pad = scfm_genes + ["PAD"]
scfm_mapping = {g: i for i, g in enumerate(scfm_genes_pad)}
scfm_index_positions = [input_mapping.get(g, G_IN) for g in scfm_genes_pad]
input_index_positions = [scfm_mapping.get(g, S) for g in input_genes]

# input-reindex as matmul: x_scfm[:, j] = x[:, p] if p < G_IN else 0  (filler='0')
S_IN_T = np.zeros((S, G_IN), dtype=np.float32)
for j, p in enumerate(scfm_index_positions):
    if p < G_IN:
        S_IN_T[j, p] = 1.0

# output-reindex as matmul: out[:, i] = enc[:, p] if p < S else mean_j enc[:, j]
M_OUT = np.zeros((G_IN, S), dtype=np.float32)
for i, p in enumerate(input_index_positions):
    if p < S:
        M_OUT[i, p] = 1.0
    else:
        M_OUT[i, :] = 1.0 / S   # filler='mean' over the seq dim


# ------------------------------- kernel -------------------------------------
def _ln(h, g, b, eps=1e-5):
    mu = jnp.mean(h, axis=-1, keepdims=True)
    var = jnp.mean(jnp.square(h - mu), axis=-1, keepdims=True)
    return (h - mu) * lax.rsqrt(var + eps) * g + b


def scfm_kernel(xve_ref, sbig_ref, pos_ref, bias_ref,
                wmat_ref, w2_ref, mout_ref, wffp_ref, vecs_ref,
                out_ref):
    f32 = jnp.float32

    wmat = wmat_ref[...]                 # (D, 128) = [Wqk | Wvo | W1]
    wqk = wmat[:, :D]                    # Wq @ Wk^T / sqrt(D)
    wvo = wmat[:, D:2 * D]               # Wv @ Wo
    w1 = wmat[:, 2 * D:]                 # FFN in

    vecs = vecs_ref[...]                 # (8, 128) packed 1-row params
    g1 = vecs[0:1, :D]
    b1 = vecs[1:2, :D]
    g2 = vecs[2:3, :D]
    b2 = vecs[3:4, :D]
    bw2 = vecs[4:5, :D]
    bw1 = vecs[5:6, :H]
    bffp = vecs[6:7, :]                  # (1, 128), zero beyond D_OUT

    # input reindex (zero filler) + value embedding + positional embedding:
    # one block-diagonal (B*S, B*G_IN) @ (B*G_IN, D) matmul.
    h = jnp.dot(sbig_ref[...], xve_ref[...],
                preferred_element_type=f32) + pos_ref[...]          # (BS, D)

    # --- single softmax-attention block (PerformerLM_GO stand-in) ---
    # scores = (h @ Wqk) @ h^T + block-diagonal mask (batches don't mix).
    hq = jnp.dot(h, wqk, preferred_element_type=f32)                # (BS, D)
    scores = lax.dot_general(hq, h, (((1,), (1,)), ((), ())),
                             preferred_element_type=f32) + bias_ref[...]
    scores = scores - jnp.max(scores, axis=-1, keepdims=True)
    p = jnp.exp(scores)                                             # (BS, BS)
    inv = pl.reciprocal(jnp.sum(p, axis=-1, keepdims=True), approx=True)
    ctx = jnp.dot(p, h, preferred_element_type=f32) * inv           # (BS, D)
    h = h + jnp.dot(ctx, wvo, preferred_element_type=f32)
    h = _ln(h, g1, b1)

    ff = jnp.maximum(jnp.dot(h, w1, preferred_element_type=f32) + bw1, 0.0)
    h = h + jnp.dot(ff, w2_ref[...], preferred_element_type=f32) + bw2
    enc = _ln(h, g2, b2)                                            # (BS, D) encodings

    # output reindex (mean filler) back to input genes + feedforward Linear,
    # emitted as a lane-dense (B*G_IN, 128) slab.
    r = jnp.dot(mout_ref[...], enc, preferred_element_type=f32)     # (BG, D)
    out_ref[...] = (jnp.dot(r, wffp_ref[...], preferred_element_type=f32)
                    + bffp).astype(out_ref.dtype)


# ------------------------------- wrapper -------------------------------------
def scfm_forward(x_flat, params):
    x = jnp.asarray(x_flat, jnp.float32).reshape(-1, G_IN)   # x.view(-1, input_gene_num)
    bsz = x.shape[0]
    BS, BG = bsz * S, bsz * G_IN

    # --- fold / pack parameters (tiny trace-time XLA ops; could be hoisted) ---
    scale = 1.0 / jnp.sqrt(jnp.float32(D))
    wqk = (params["wq"] @ params["wk"].T) * scale            # (D, D)
    wvo = params["wv"] @ params["wo"]                        # (D, D)
    wmat = jnp.concatenate([wqk, wvo, params["w1"]], axis=1)  # (D, 128)

    wffp = jnp.zeros((D, D_OUT_PAD), jnp.float32).at[:, :D_OUT].set(params["wff"])
    vecs = jnp.zeros((8, D_OUT_PAD), jnp.float32)
    vecs = vecs.at[0, :D].set(params["g1"][0]).at[1, :D].set(params["b1"][0])
    vecs = vecs.at[2, :D].set(params["g2"][0]).at[3, :D].set(params["b2"][0])
    vecs = vecs.at[4, :D].set(params["bw2"][0]).at[5, :H].set(params["bw1"][0])
    vecs = vecs.at[6, :D_OUT].set(params["bff"][0])

    # block-diagonal batched reindex matrices, tiled pos-emb, attention mask
    eye_b = jnp.eye(bsz, dtype=jnp.float32)
    sbig = jnp.kron(eye_b, params["S_in_T"])                 # (BS, BG)
    mout_big = jnp.kron(eye_b, params["M_out"])              # (BG, BS)
    pos_t = jnp.tile(params["pos"], (bsz, 1))                # (BS, D)
    bias = jnp.kron(1.0 - eye_b,
                    jnp.full((S, S), -1e30, jnp.float32))    # (BS, BS) block mask

    # value embedding as a lane-dense (BG, D) operand (feeds the embed matmul);
    # avoids any lane-width-1 tensors / matvecs inside the kernel.
    xve = x.reshape(BG, 1) * params["ve"]                    # (BG, D)

    out = pl.pallas_call(
        scfm_kernel,
        out_shape=jax.ShapeDtypeStruct((BG, D_OUT_PAD), jnp.float32),
    )(xve, sbig, pos_t, bias, wmat, params["w2"], mout_big, wffp, vecs)

    return out[:, :D_OUT].reshape(bsz, G_IN, D_OUT)


# ------------------------- pure-JAX reference --------------------------------
def scfm_forward_ref(x_flat, params):
    x = jnp.asarray(x_flat, jnp.float32).reshape(-1, G_IN)
    x_scfm = jnp.einsum("bg,sg->bs", x, params["S_in_T"])
    h = x_scfm[:, :, None] * params["ve"][None] + params["pos"][None]
    q = h @ params["wq"]; k = h @ params["wk"]; v = h @ params["wv"]
    scores = jnp.einsum("bsd,btd->bst", q, k) / jnp.sqrt(jnp.float32(D))
    p = jax.nn.softmax(scores, axis=-1)
    h = h + jnp.einsum("bst,btd->bsd", p, v) @ params["wo"]
    h = _ln(h, params["g1"], params["b1"])
    ff = jax.nn.relu(h @ params["w1"] + params["bw1"])
    h = h + ff @ params["w2"] + params["bw2"]
    enc = _ln(h, params["g2"], params["b2"])
    r = jnp.einsum("gs,bsd->bgd", params["M_out"], enc)
    return r @ params["wff"] + params["bff"]


# ------------------------------ param init -----------------------------------
def init_params(key):
    ks = jax.random.split(key, 10)
    w = lambda k, shp, s=0.05: s * jax.random.normal(k, shp, jnp.float32)
    return {
        "S_in_T": jnp.asarray(S_IN_T),
        "M_out": jnp.asarray(M_OUT),
        "ve": w(ks[0], (1, D)),
        "pos": w(ks[1], (S, D)),
        "wq": w(ks[2], (D, D)), "wk": w(ks[3], (D, D)),
        "wv": w(ks[4], (D, D)), "wo": w(ks[5], (D, D)),
        "g1": jnp.ones((1, D), jnp.float32), "b1": jnp.zeros((1, D), jnp.float32),
        "w1": w(ks[6], (D, H)), "bw1": jnp.zeros((1, H), jnp.float32),
        "w2": w(ks[7], (H, D)), "bw2": jnp.zeros((1, D), jnp.float32),
        "g2": jnp.ones((1, D), jnp.float32), "b2": jnp.zeros((1, D), jnp.float32),
        "wff": w(ks[8], (D, D_OUT)), "bff": jnp.zeros((1, D_OUT), jnp.float32),
    }


if __name__ == "__main__":
    root = jax.random.PRNGKey(0)
    k_params, k_x = jax.random.split(root)
    params = init_params(k_params)
    # forward accepts any shape that flattens to (-1, input_gene_num)
    x = jax.random.normal(k_x, (B * G_IN,), jnp.float32)

    out = scfm_forward(x, params)
    out = jax.block_until_ready(out)

    ref = jax.block_until_ready(scfm_forward_ref(x, params))
    assert out.shape == (B, G_IN, D_OUT)
    assert bool(jnp.all(jnp.isfinite(out)))
    # slightly looser tolerance: folded Wq·Wk^T / Wv·Wo and approx reciprocal
    # change rounding vs. the unfused exact-softmax reference.
    np.testing.assert_allclose(np.asarray(out), np.asarray(ref),
                               rtol=1e-3, atol=1e-3)
    print("KERNEL_OK")
</pallas_src>

<mosaic_0001>
module attributes {stable_mosaic.version = 11 : i64} {
  func.func @scfm_kernel(%arg0: memref<48x32xf32, #tpu.memory_space<vmem>>, %arg1: memref<32x48xf32, #tpu.memory_space<vmem>>, %arg2: memref<32x32xf32, #tpu.memory_space<vmem>>, %arg3: memref<32x32xf32, #tpu.memory_space<vmem>>, %arg4: memref<32x128xf32, #tpu.memory_space<vmem>>, %arg5: memref<64x32xf32, #tpu.memory_space<vmem>>, %arg6: memref<48x32xf32, #tpu.memory_space<vmem>>, %arg7: memref<32x128xf32, #tpu.memory_space<vmem>>, %arg8: memref<8x128xf32, #tpu.memory_space<vmem>>, %arg9: memref<48x128xf32, #tpu.memory_space<vmem>>) attributes {dimension_semantics = [], scalar_prefetch = 0 : i64, scratch_operands = 0 : i64, tpu.core_type = #tpu.core_type<tc>} {
    %c0 = arith.constant 0 : index
    %c0_0 = arith.constant 0 : index
    %0 = vector.load %arg4[%c0, %c0_0] : memref<32x128xf32, #tpu.memory_space<vmem>>, vector<32x128xf32>
    %1 = vector.extract_strided_slice %0 {offsets = [0, 0], sizes = [32, 32], strides = [1, 1]} : vector<32x128xf32> to vector<32x32xf32>
    %2 = vector.extract_strided_slice %0 {offsets = [0, 32], sizes = [32, 32], strides = [1, 1]} : vector<32x128xf32> to vector<32x32xf32>
    %3 = vector.extract_strided_slice %0 {offsets = [0, 64], sizes = [32, 64], strides = [1, 1]} : vector<32x128xf32> to vector<32x64xf32>
    %c0_1 = arith.constant 0 : index
    %c0_2 = arith.constant 0 : index
    %4 = vector.load %arg8[%c0_1, %c0_2] : memref<8x128xf32, #tpu.memory_space<vmem>>, vector<8x128xf32>
    %5 = vector.extract_strided_slice %4 {offsets = [0, 0], sizes = [1, 32], strides = [1, 1]} : vector<8x128xf32> to vector<1x32xf32>
    %6 = vector.extract_strided_slice %4 {offsets = [1, 0], sizes = [1, 32], strides = [1, 1]} : vector<8x128xf32> to vector<1x32xf32>
    %7 = vector.extract_strided_slice %4 {offsets = [2, 0], sizes = [1, 32], strides = [1, 1]} : vector<8x128xf32> to vector<1x32xf32>
    %8 = vector.extract_strided_slice %4 {offsets = [3, 0], sizes = [1, 32], strides = [1, 1]} : vector<8x128xf32> to vector<1x32xf32>
    %9 = vector.extract_strided_slice %4 {offsets = [4, 0], sizes = [1, 32], strides = [1, 1]} : vector<8x128xf32> to vector<1x32xf32>
    %10 = vector.extract_strided_slice %4 {offsets = [5, 0], sizes = [1, 64], strides = [1, 1]} : vector<8x128xf32> to vector<1x64xf32>
    %11 = vector.extract_strided_slice %4 {offsets = [6, 0], sizes = [1, 128], strides = [1, 1]} : vector<8x128xf32> to vector<1x128xf32>
    %c0_3 = arith.constant 0 : index
    %c0_4 = arith.constant 0 : index
    %12 = vector.load %arg1[%c0_3, %c0_4] : memref<32x48xf32, #tpu.memory_space<vmem>>, vector<32x48xf32>
    %c0_5 = arith.constant 0 : index
    %c0_6 = arith.constant 0 : index
    %13 = vector.load %arg0[%c0_5, %c0_6] : memref<48x32xf32, #tpu.memory_space<vmem>>, vector<48x32xf32>
    %cst = arith.constant dense<0.000000e+00> : vector<32x32xf32>
    %14 = tpu.matmul %12, %13, %cst {dimension_numbers = #tpu.dot_dimension_numbers<[1], [0], [0], [1], [0, 0, 1, 1], [], []>} : vector<32x48xf32>, vector<48x32xf32>, vector<32x32xf32> -> vector<32x32xf32>
    %c0_7 = arith.constant 0 : index
    %c0_8 = arith.constant 0 : index
    %15 = vector.load %arg2[%c0_7, %c0_8] : memref<32x32xf32, #tpu.memory_space<vmem>>, vector<32x32xf32>
    %16 = arith.addf %14, %15 : vector<32x32xf32>
    %cst_9 = arith.constant dense<0.000000e+00> : vector<32x32xf32>
    %17 = tpu.matmul %16, %1, %cst_9 {dimension_numbers = #tpu.dot_dimension_numbers<[1], [0], [0], [1], [0, 0, 1, 1], [], []>} : vector<32x32xf32>, vector<32x32xf32>, vector<32x32xf32> -> vector<32x32xf32>
    %cst_10 = arith.constant dense<0.000000e+00> : vector<32x32xf32>
    %18 = tpu.matmul %17, %16, %cst_10 {dimension_numbers = #tpu.dot_dimension_numbers<[1], [1], [0], [0], [0, 0, 1, 0], [], []>} : vector<32x32xf32>, vector<32x32xf32>, vector<32x32xf32> -> vector<32x32xf32>
    %c0_11 = arith.constant 0 : index
    %c0_12 = arith.constant 0 : index
    %19 = vector.load %arg3[%c0_11, %c0_12] : memref<32x32xf32, #tpu.memory_space<vmem>>, vector<32x32xf32>
    %20 = arith.addf %18, %19 : vector<32x32xf32>
    %cst_13 = arith.constant dense<0xFF800000> : vector<32xf32>
    %21 = vector.multi_reduction <maximumf>, %20, %cst_13 [1] : vector<32x32xf32> to vector<32xf32>
    %22 = vector.shape_cast %21 : vector<32xf32> to vector<32x1xf32>
    %23 = vector.broadcast %22 : vector<32x1xf32> to vector<32x32xf32>
    %24 = arith.subf %20, %23 : vector<32x32xf32>
    %25 = math.exp %24 : vector<32x32xf32>
    %cst_14 = arith.constant dense<0.000000e+00> : vector<32xf32>
    %26 = vector.multi_reduction <add>, %25, %cst_14 [1] : vector<32x32xf32> to vector<32xf32>
    %27 = vector.shape_cast %26 : vector<32xf32> to vector<32x1xf32>
    %28 = tpu.reciprocal %27 {approx = true} : vector<32x1xf32> -> vector<32x1xf32>
    %cst_15 = arith.constant dense<0.000000e+00> : vector<32x32xf32>
    %29 = tpu.matmul %25, %16, %cst_15 {dimension_numbers = #tpu.dot_dimension_numbers<[1], [0], [0], [1], [0, 0, 1, 1], [], []>} : vector<32x32xf32>, vector<32x32xf32>, vector<32x32xf32> -> vector<32x32xf32>
    %30 = vector.broadcast %28 : vector<32x1xf32> to vector<32x32xf32>
    %31 = arith.mulf %29, %30 : vector<32x32xf32>
    %cst_16 = arith.constant dense<0.000000e+00> : vector<32x32xf32>
    %32 = tpu.matmul %31, %2, %cst_16 {dimension_numbers = #tpu.dot_dimension_numbers<[1], [0], [0], [1], [0, 0, 1, 1], [], []>} : vector<32x32xf32>, vector<32x32xf32>, vector<32x32xf32> -> vector<32x32xf32>
    %33 = arith.addf %16, %32 : vector<32x32xf32>
    %cst_17 = arith.constant dense<0.000000e+00> : vector<32xf32>
    %34 = vector.multi_reduction <add>, %33, %cst_17 [1] : vector<32x32xf32> to vector<32xf32>
    %35 = vector.shape_cast %34 : vector<32xf32> to vector<32x1xf32>
    %cst_18 = arith.constant 3.200000e+01 : f32
    %36 = vector.broadcast %cst_18 : f32 to vector<32x1xf32>
    %37 = arith.divf %35, %36 : vector<32x1xf32>
    %38 = vector.broadcast %37 : vector<32x1xf32> to vector<32x32xf32>
    %39 = arith.subf %33, %38 : vector<32x32xf32>
    %40 = arith.mulf %39, %39 : vector<32x32xf32>
    %cst_19 = arith.constant dense<0.000000e+00> : vector<32xf32>
    %41 = vector.multi_reduction <add>, %40, %cst_19 [1] : vector<32x32xf32> to vector<32xf32>
    %42 = vector.shape_cast %41 : vector<32xf32> to vector<32x1xf32>
    %cst_20 = arith.constant 3.200000e+01 : f32
    %43 = vector.broadcast %cst_20 : f32 to vector<32x1xf32>
    %44 = arith.divf %42, %43 : vector<32x1xf32>
    %45 = vector.broadcast %37 : vector<32x1xf32> to vector<32x32xf32>
    %46 = arith.subf %33, %45 : vector<32x32xf32>
    %cst_21 = arith.constant 9.99999974E-6 : f32
    %47 = vector.broadcast %cst_21 : f32 to vector<32x1xf32>
    %48 = arith.addf %44, %47 : vector<32x1xf32>
    %49 = math.rsqrt %48 : vector<32x1xf32>
    %50 = vector.broadcast %49 : vector<32x1xf32> to vector<32x32xf32>
    %51 = arith.mulf %46, %50 : vector<32x32xf32>
    %52 = vector.broadcast %5 : vector<1x32xf32> to vector<32x32xf32>
    %53 = arith.mulf %51, %52 : vector<32x32xf32>
    %54 = vector.broadcast %6 : vector<1x32xf32> to vector<32x32xf32>
    %55 = arith.addf %53, %54 : vector<32x32xf32>
    %cst_22 = arith.constant dense<0.000000e+00> : vector<32x64xf32>
    %56 = tpu.matmul %55, %3, %cst_22 {dimension_numbers = #tpu.dot_dimension_numbers<[1], [0], [0], [1], [0, 0, 1, 1], [], []>} : vector<32x32xf32>, vector<32x64xf32>, vector<32x64xf32> -> vector<32x64xf32>
    %57 = vector.broadcast %10 : vector<1x64xf32> to vector<32x64xf32>
    %58 = arith.addf %56, %57 : vector<32x64xf32>
    %cst_23 = arith.constant 0.000000e+00 : f32
    %59 = vector.broadcast %cst_23 : f32 to vector<32x64xf32>
    %60 = arith.maximumf %58, %59 : vector<32x64xf32>
    %c0_24 = arith.constant 0 : index
    %c0_25 = arith.constant 0 : index
    %61 = vector.load %arg5[%c0_24, %c0_25] : memref<64x32xf32, #tpu.memory_space<vmem>>, vector<64x32xf32>
    %cst_26 = arith.constant dense<0.000000e+00> : vector<32x32xf32>
    %62 = tpu.matmul %60, %61, %cst_26 {dimension_numbers = #tpu.dot_dimension_numbers<[1], [0], [0], [1], [0, 0, 1, 1], [], []>} : vector<32x64xf32>, vector<64x32xf32>, vector<32x32xf32> -> vector<32x32xf32>
    %63 = arith.addf %55, %62 : vector<32x32xf32>
    %64 = vector.broadcast %9 : vector<1x32xf32> to vector<32x32xf32>
    %65 = arith.addf %63, %64 : vector<32x32xf32>
    %cst_27 = arith.constant dense<0.000000e+00> : vector<32xf32>
    %66 = vector.multi_reduction <add>, %65, %cst_27 [1] : vector<32x32xf32> to vector<32xf32>
    %67 = vector.shape_cast %66 : vector<32xf32> to vector<32x1xf32>
    %cst_28 = arith.constant 3.200000e+01 : f32
    %68 = vector.broadcast %cst_28 : f32 to vector<32x1xf32>
    %69 = arith.divf %67, %68 : vector<32x1xf32>
    %70 = vector.broadcast %69 : vector<32x1xf32> to vector<32x32xf32>
    %71 = arith.subf %65, %70 : vector<32x32xf32>
    %72 = arith.mulf %71, %71 : vector<32x32xf32>
    %cst_29 = arith.constant dense<0.000000e+00> : vector<32xf32>
    %73 = vector.multi_reduction <add>, %72, %cst_29 [1] : vector<32x32xf32> to vector<32xf32>
    %74 = vector.shape_cast %73 : vector<32xf32> to vector<32x1xf32>
    %cst_30 = arith.constant 3.200000e+01 : f32
    %75 = vector.broadcast %cst_30 : f32 to vector<32x1xf32>
    %76 = arith.divf %74, %75 : vector<32x1xf32>
    %77 = vector.broadcast %69 : vector<32x1xf32> to vector<32x32xf32>
    %78 = arith.subf %65, %77 : vector<32x32xf32>
    %cst_31 = arith.constant 9.99999974E-6 : f32
    %79 = vector.broadcast %cst_31 : f32 to vector<32x1xf32>
    %80 = arith.addf %76, %79 : vector<32x1xf32>
    %81 = math.rsqrt %80 : vector<32x1xf32>
    %82 = vector.broadcast %81 : vector<32x1xf32> to vector<32x32xf32>
    %83 = arith.mulf %78, %82 : vector<32x32xf32>
    %84 = vector.broadcast %7 : vector<1x32xf32> to vector<32x32xf32>
    %85 = arith.mulf %83, %84 : vector<32x32xf32>
    %86 = vector.broadcast %8 : vector<1x32xf32> to vector<32x32xf32>
    %87 = arith.addf %85, %86 : vector<32x32xf32>
    %c0_32 = arith.constant 0 : index
    %c0_33 = arith.constant 0 : index
    %88 = vector.load %arg6[%c0_32, %c0_33] : memref<48x32xf32, #tpu.memory_space<vmem>>, vector<48x32xf32>
    %cst_34 = arith.constant dense<0.000000e+00> : vector<48x32xf32>
    %89 = tpu.matmul %88, %87, %cst_34 {dimension_numbers = #tpu.dot_dimension_numbers<[1], [0], [0], [1], [0, 0, 1, 1], [], []>} : vector<48x32xf32>, vector<32x32xf32>, vector<48x32xf32> -> vector<48x32xf32>
    %c0_35 = arith.constant 0 : index
    %c0_36 = arith.constant 0 : index
    %90 = vector.load %arg7[%c0_35, %c0_36] : memref<32x128xf32, #tpu.memory_space<vmem>>, vector<32x128xf32>
    %cst_37 = arith.constant dense<0.000000e+00> : vector<48x128xf32>
    %91 = tpu.matmul %89, %90, %cst_37 {dimension_numbers = #tpu.dot_dimension_numbers<[1], [0], [0], [1], [0, 0, 1, 1], [], []>} : vector<48x32xf32>, vector<32x128xf32>, vector<48x128xf32> -> vector<48x128xf32>
    %92 = vector.broadcast %11 : vector<1x128xf32> to vector<48x128xf32>
    %93 = arith.addf %91, %92 : vector<48x128xf32>
    %c0_38 = arith.constant 0 : index
    %c0_39 = arith.constant 0 : index
    %94 = vector.load %arg9[%c0_38, %c0_39] : memref<48x128xf32, #tpu.memory_space<vmem>>, vector<48x128xf32>
    tpu.vector_store %arg9[%c0_38, %c0_39], %93 {strides = array<i32>} : memref<48x128xf32, #tpu.memory_space<vmem>>, vector<48x128xf32>,
    return
  }
}

</mosaic_0001>

<llo_original>
// kernel: tpu_custom_call.1
$region0: #{tpu_custom_call.1}
  #allocation0 [shape = 'u32[]', space=smem, size = 0x4, offset = 0x4, fixed_abs, tag = 'smem constant byte address 0x4 - core index']
  #allocation1 [shape = 'u32[144,128]{1,0:T(1,128)}', space=vmem, size = 0x12000, scoped, tag = 'internal scratch']
  %s0 = inlined_call_operand.vmem [shape: f32[48,32], index: 0, kind: input, shape index: {}]
  %s1 = inlined_call_operand.vmem [shape: f32[32,48], index: 1, kind: input, shape index: {}]
  %s2 = inlined_call_operand.vmem [shape: f32[32,32], index: 2, kind: input, shape index: {}]
  %s3 = inlined_call_operand.vmem [shape: f32[32,32], index: 3, kind: input, shape index: {}]
  %s4 = inlined_call_operand.vmem [shape: f32[32,128], index: 4, kind: input, shape index: {}]
  %s5 = inlined_call_operand.vmem [shape: f32[64,32], index: 5, kind: input, shape index: {}]
  %s6 = inlined_call_operand.vmem [shape: f32[48,32], index: 6, kind: input, shape index: {}]
  %s7 = inlined_call_operand.vmem [shape: f32[32,128], index: 7, kind: input, shape index: {}]
  %s8 = inlined_call_operand.vmem [shape: f32[8,128], index: 8, kind: input, shape index: {}]
  %s9 = inlined_call_operand.hbm [shape: f32[48,128], index: 9, kind: output, shape index: {}]
  %s10 = sld [smem:[#allocation0]]
  $region46: #{tpu_custom_call.1} parent=0
    _
  %s12 = ssub.s32 1, %s10
  %s13 = scalar_select 0, %s12, %s10
  $region1: #{tpu_custom_call.1} parent=0
    #allocation2 [shape = 'u8[24576]{0}', space=vmem, size = 0x6000, scoped, tag = 'output window, operand 0, single buffered']
    #allocation3 [shape = 's32[1]{0}', space=sflag, size = 0x4, scoped, tag = 'scoped memory for tpu_custom_call.1']
    %14 = vsyncpa [#allocation3], 0
    // Predicated region
    $region2: #{tpu_custom_call.1} parent=1 // pred_check
      _
    $region3: #{tpu_custom_call.1} parent=1 // pred_check_branch
      %16 = sbr.rel (0) target = $region5
    $region4: #{tpu_custom_call.1} parent=1 // pred_region
      _
    $region5: #{tpu_custom_call.1} parent=1 // pred_fallthru
      _
    // Predicated region
    $region6: #{tpu_custom_call.1} parent=1 // pred_check
      _
    $region7: #{tpu_custom_call.1} parent=1 // pred_check_branch
      %18 = sbr.rel (0) target = $region9
    $region8: #{tpu_custom_call.1} parent=1 // pred_region
      _
    $region9: #{tpu_custom_call.1} parent=1 // pred_fallthru
      _
    // Predicated region
    $region10: #{tpu_custom_call.1} parent=1 // pred_check
      _
    $region11: #{tpu_custom_call.1} parent=1 // pred_check_branch
      %20 = sbr.rel (0) target = $region13
    $region12: #{tpu_custom_call.1} parent=1 // pred_region
      _
    $region13: #{tpu_custom_call.1} parent=1 // pred_fallthru
      _
    // Predicated region
    $region14: #{tpu_custom_call.1} parent=1 // pred_check
      _
    $region15: #{tpu_custom_call.1} parent=1 // pred_check_branch
      %22 = sbr.rel (0) target = $region17
    $region16: #{tpu_custom_call.1} parent=1 // pred_region
      _
    $region17: #{tpu_custom_call.1} parent=1 // pred_fallthru
      _
    // Predicated region
    $region18: #{tpu_custom_call.1} parent=1 // pred_check
      _
    $region19: #{tpu_custom_call.1} parent=1 // pred_check_branch
      %24 = sbr.rel (0) target = $region21
    $region20: #{tpu_custom_call.1} parent=1 // pred_region
      _
    $region21: #{tpu_custom_call.1} parent=1 // pred_fallthru
      _
    // Predicated region
    $region22: #{tpu_custom_call.1} parent=1 // pred_check
      _
    $region23: #{tpu_custom_call.1} parent=1 // pred_check_branch
      %26 = sbr.rel (0) target = $region25
    $region24: #{tpu_custom_call.1} parent=1 // pred_region
      _
    $region25: #{tpu_custom_call.1} parent=1 // pred_fallthru
      _
    // Predicated region
    $region26: #{tpu_custom_call.1} parent=1 // pred_check
      _
    $region27: #{tpu_custom_call.1} parent=1 // pred_check_branch
      %28 = sbr.rel (0) target = $region29
    $region28: #{tpu_custom_call.1} parent=1 // pred_region
      _
    $region29: #{tpu_custom_call.1} parent=1 // pred_fallthru
      _
    // Predicated region
    $region30: #{tpu_custom_call.1} parent=1 // pred_check
      _
    $region31: #{tpu_custom_call.1} parent=1 // pred_check_branch
      %30 = sbr.rel (0) target = $region33
    $region32: #{tpu_custom_call.1} parent=1 // pred_region
      _
    $region33: #{tpu_custom_call.1} parent=1 // pred_fallthru
      _
    // Predicated region
    $region34: #{tpu_custom_call.1} parent=1 // pred_check
      _
    $region35: #{tpu_custom_call.1} parent=1 // pred_check_branch
      %32 = sbr.rel (0) target = $region37
    $region36: #{tpu_custom_call.1} parent=1 // pred_region
      _
    $region37: #{tpu_custom_call.1} parent=1 // pred_fallthru
      _
    %v33 = vld [vmem:[%s4] sm:$0xff]
    %v34 = vld [vmem:[%s4 + $0x8] sm:$0xff]
    %v35 = vld [vmem:[%s4 + $0x10] sm:$0xff]
    %v36 = vld [vmem:[%s4 + $0x18] sm:$0xff]
    %v37 = vld [vmem:[%s8] sm:$0xff]
    %v38 = vld [vmem:[%s1] sm:$0xff]
    %v39 = vld [vmem:[%s1 + $0x8] sm:$0xff]
    %v40 = vld [vmem:[%s1 + $0x10] sm:$0xff]
    %v41 = vld [vmem:[%s1 + $0x18] sm:$0xff]
    %v42 = vld [vmem:[%s0] sm:$0xff]
    %v43 = vld [vmem:[%s0 + $0x8] sm:$0xff]
    %v44 = vld [vmem:[%s0 + $0x10] sm:$0xff]
    %v45 = vld [vmem:[%s0 + $0x18] sm:$0xff]
    %v46 = vld [vmem:[%s0 + $0x20] sm:$0xff]
    %v47 = vld [vmem:[%s0 + $0x28] sm:$0xff]
    %v48 = vld [vmem:[%s2] sm:$0xff]
    %v49 = vld [vmem:[%s2 + $0x8] sm:$0xff]
    %v50 = vld [vmem:[%s2 + $0x10] sm:$0xff]
    %v51 = vld [vmem:[%s2 + $0x18] sm:$0xff]
    %vm52 = vcmask 392192
    %v54 = vsel %vm52, %v38, 0
    %v57 = vsel %vm52, %v39, 0
    %v60 = vsel %vm52, %v40, 0
    %v63 = vsel %vm52, %v41, 0
    %65 = vmatprep.subr.mxu0 0.0
    %66 = vmatpush1.msra.mxu0 %v42
    %67 = vmatprep.subr.mxu0 0.0
    %68 = vmatpush1.msra.mxu0 %v43
    %69 = vmatprep.subr.mxu0 0.0
    %70 = vmatpush1.msra.mxu0 %v44
    %71 = vmatprep.subr.mxu0 0.0
    %72 = vmatpush1.msra.mxu0 %v45
    %73 = vmatprep.subr.mxu0 0.0
    %74 = vmatpush1.msra.mxu0 %v46
    %75 = vmatprep.subr.mxu0 0.0
    %76 = vmatpush1.msra.mxu0 %v47
    %77 = vmatprep.subr.mxu0 0.0
    %78 = vmatpush1.msra.mxu0 0.0
    %79 = vmatprep.subr.mxu0 0.0
    %80 = vmatpush1.msra.mxu0 0.0
    %81 = vmatprep.subr.mxu0 0.0
    %82 = vmatpush1.msra.mxu0 0.0
    %83 = vmatprep.subr.mxu0 0.0
    %84 = vmatpush1.msra.mxu0 0.0
    %85 = vmatprep.subr.mxu0 0.0
    %86 = vmatpush1.msra.mxu0 0.0
    %87 = vmatprep.subr.mxu0 0.0
    %88 = vmatpush1.msra.mxu0 0.0
    %89 = vmatprep.subr.mxu0 0.0
    %90 = vmatpush1.msra.mxu0 0.0
    %91 = vmatprep.subr.mxu0 0.0
    %92 = vmatpush1.msra.mxu0 0.0
    %93 = vmatprep.subr.mxu0 0.0
    %94 = vmatpush1.msra.mxu0 0.0
    %95 = vmatprep.subr.mxu0 0.0
    %96 = vmatpush1.msra.mxu0 0.0
    %97 = vmatprep.subr.mxu0 0.0
    %98 = vmatpush1.msra.mxu0 0.0
    %99 = vmatprep.subr.mxu0 0.0
    %100 = vmatpush1.msra.mxu0 0.0
    %101 = vmatprep.subr.mxu0 0.0
    %102 = vmatpush1.msra.mxu0 0.0
    %103 = vmatprep.subr.mxu0 0.0
    %104 = vmatpush1.msra.mxu0 0.0
    %105 = vmatprep.subr.mxu0 0.0
    %106 = vmatpush1.msra.mxu0 0.0
    %107 = vmatprep.subr.mxu0 0.0
    %108 = vmatpush1.msra.mxu0 0.0
    %109 = vmatprep.subr.mxu0 0.0
    %110 = vmatpush1.msra.mxu0 0.0
    %111 = vmatprep.subr.mxu0 0.0
    %112 = vmatpush1.msra.mxu0 0.0
    %113 = vmatprep.subr.mxu0 0.0
    %114 = vmatpush1.msra.mxu0 0.0
    %115 = vmatprep.subr.mxu0 0.0
    %116 = vmatpush1.msra.mxu0 0.0
    %117 = vmatprep.subr.mxu0 0.0
    %118 = vmatpush1.msra.mxu0 0.0
    %119 = vmatprep.subr.mxu0 0.0
    %120 = vmatpush1.msra.mxu0 0.0
    %121 = vmatprep.subr.mxu0 0.0
    %122 = vmatpush1.msra.mxu0 0.0
    %123 = vmatprep.subr.mxu0 0.0
    %124 = vmatpush1.msra.mxu0 0.0
    %125 = vmatprep.subr.mxu0 0.0
    %126 = vmatpush1.msra.mxu0 0.0
    %127 = vmatprep.subr.mxu0 0.0
    %128 = vmatpush1.msra.mxu0 0.0
    %129 = vmatprep.mubr.f32.mxu0 0.0
    %130 = vmatmul.mubr.f32.gmra.mrb[0].mxu0 %v54
    %v131 = vpop.f32.mrb[0].mxu0
    %v132 = vadd.f32 %v48, %v131
    %v133 = vpop.f32.mrb[0].mxu0
    %134 = vmatprep.mubr.f32.mxu0 0.0
    %135 = vmatmul.mubr.f32.gmra.mrb[0].mxu0 %v57
    %v136 = vpop.f32.mrb[0].mxu0
    %v137 = vadd.f32 %v49, %v136
    %v138 = vpop.f32.mrb[0].mxu0
    %139 = vmatprep.mubr.f32.mxu0 0.0
    %140 = vmatmul.mubr.f32.gmra.mrb[0].mxu0 %v60
    %v141 = vpop.f32.mrb[0].mxu0
    %v142 = vadd.f32 %v50, %v141
    %v143 = vpop.f32.mrb[0].mxu0
    %144 = vmatprep.mubr.f32.mxu0 0.0
    %145 = vmatmul.mubr.f32.gmra.mrb[0].mxu0 %v63
    %v146 = vpop.f32.mrb[0].mxu0
    %v147 = vadd.f32 %v51, %v146
    %v148 = vpop.f32.mrb[0].mxu0
    %149 = vdwg.mxu0
    %vm150 = vcmask 261120
    %v152 = vsel %vm150, %v132, 0
    %v155 = vsel %vm150, %v137, 0
    %v158 = vsel %vm150, %v142, 0
    %v161 = vsel %vm150, %v147, 0
    %163 = vmatprep.subr.mxu0 0.0
    %164 = vmatpush1.msra.mxu0 %v33
    %165 = vmatprep.subr.mxu0 0.0
    %166 = vmatpush1.msra.mxu0 %v34
    %167 = vmatprep.subr.mxu0 0.0
    %168 = vmatpush1.msra.mxu0 %v35
    %169 = vmatprep.subr.mxu0 0.0
    %170 = vmatpush1.msra.mxu0 %v36
    %171 = vmatprep.subr.mxu0 0.0
    %172 = vmatpush1.msra.mxu0 0.0
    %173 = vmatprep.subr.mxu0 0.0
    %174 = vmatpush1.msra.mxu0 0.0
    %175 = vmatprep.subr.mxu0 0.0
    %176 = vmatpush1.msra.mxu0 0.0
    %177 = vmatprep.subr.mxu0 0.0
    %178 = vmatpush1.msra.mxu0 0.0
    %179 = vmatprep.subr.mxu0 0.0
    %180 = vmatpush1.msra.mxu0 0.0
    %181 = vmatprep.subr.mxu0 0.0
    %182 = vmatpush1.msra.mxu0 0.0
    %183 = vmatprep.subr.mxu0 0.0
    %184 = vmatpush1.msra.mxu0 0.0
    %185 = vmatprep.subr.mxu0 0.0
    %186 = vmatpush1.msra.mxu0 0.0
    %187 = vmatprep.subr.mxu0 0.0
    %188 = vmatpush1.msra.mxu0 0.0
    %189 = vmatprep.subr.mxu0 0.0
    %190 = vmatpush1.msra.mxu0 0.0
    %191 = vmatprep.subr.mxu0 0.0
    %192 = vmatpush1.msra.mxu0 0.0
    %193 = vmatprep.subr.mxu0 0.0
    %194 = vmatpush1.msra.mxu0 0.0
    %195 = vmatprep.subr.mxu0 0.0
    %196 = vmatpush1.msra.mxu0 0.0
    %197 = vmatprep.subr.mxu0 0.0
    %198 = vmatpush1.msra.mxu0 0.0
    %199 = vmatprep.subr.mxu0 0.0
    %200 = vmatpush1.msra.mxu0 0.0
    %201 = vmatprep.subr.mxu0 0.0
    %202 = vmatpush1.msra.mxu0 0.0
    %203 = vmatprep.subr.mxu0 0.0
    %204 = vmatpush1.msra.mxu0 0.0
    %205 = vmatprep.subr.mxu0 0.0
    %206 = vmatpush1.msra.mxu0 0.0
    %207 = vmatprep.subr.mxu0 0.0
    %208 = vmatpush1.msra.mxu0 0.0
    %209 = vmatprep.subr.mxu0 0.0
    %210 = vmatpush1.msra.mxu0 0.0
    %211 = vmatprep.subr.mxu0 0.0
    %212 = vmatpush1.msra.mxu0 0.0
    %213 = vmatprep.subr.mxu0 0.0
    %214 = vmatpush1.msra.mxu0 0.0
    %215 = vmatprep.subr.mxu0 0.0
    %216 = vmatpush1.msra.mxu0 0.0
    %217 = vmatprep.subr.mxu0 0.0
    %218 = vmatpush1.msra.mxu0 0.0
    %219 = vmatprep.subr.mxu0 0.0
    %220 = vmatpush1.msra.mxu0 0.0
    %221 = vmatprep.subr.mxu0 0.0
    %222 = vmatpush1.msra.mxu0 0.0
    %223 = vmatprep.subr.mxu0 0.0
    %224 = vmatpush1.msra.mxu0 0.0
    %225 = vmatprep.subr.mxu0 0.0
    %226 = vmatpush1.msra.mxu0 0.0
    %227 = vmatprep.mubr.f32.mxu0 0.0
    %228 = vmatmul.mubr.f32.gmra.mrb[0].mxu0 %v152
    %v229 = vpop.f32.mrb[0].mxu0
    %v230 = vadd.f32 0.0, %v229
    %v231 = vpop.f32.mrb[0].mxu0
    %232 = vmatprep.mubr.f32.mxu0 0.0
    %233 = vmatmul.mubr.f32.gmra.mrb[0].mxu0 %v155
    %v234 = vpop.f32.mrb[0].mxu0
    %v235 = vadd.f32 0.0, %v234
    %v236 = vpop.f32.mrb[0].mxu0
    %237 = vmatprep.mubr.f32.mxu0 0.0
    %238 = vmatmul.mubr.f32.gmra.mrb[0].mxu0 %v158
    %v239 = vpop.f32.mrb[0].mxu0
    %v240 = vadd.f32 0.0, %v239
    %v241 = vpop.f32.mrb[0].mxu0
    %242 = vmatprep.mubr.f32.mxu0 0.0
    %243 = vmatmul.mubr.f32.gmra.mrb[0].mxu0 %v161
    %v244 = vpop.f32.mrb[0].mxu0
    %v245 = vadd.f32 0.0, %v244
    %v246 = vpop.f32.mrb[0].mxu0
    %247 = vdwg.mxu0
    %v248 = vld [vmem:[%s3] sm:$0xff]
    %v249 = vld [vmem:[%s3 + $0x8] sm:$0xff]
    %v250 = vld [vmem:[%s3 + $0x10] sm:$0xff]
    %v251 = vld [vmem:[%s3 + $0x18] sm:$0xff]
    %v253 = vsel %vm150, %v230, 0
    %v256 = vsel %vm150, %v235, 0
    %v259 = vsel %vm150, %v240, 0
    %v262 = vsel %vm150, %v245, 0
    %264 = vmatprep.subr.mxu0 0.0
    %265 = vmatpush1.xpose.msra.mxu0 %v152
    %266 = vmatprep.subr.mxu0 0.0
    %267 = vmatpush1.xpose.msra.mxu0 %v155
    %268 = vmatprep.subr.mxu0 0.0
    %269 = vmatpush1.xpose.msra.mxu0 %v158
    %270 = vmatprep.subr.mxu0 0.0
    %271 = vmatpush1.xpose.msra.mxu0 %v161
    %272 = vmatprep.subr.mxu0 0.0
    %273 = vmatpush1.xpose.msra.mxu0 0.0
    %274 = vmatprep.subr.mxu0 0.0
    %275 = vmatpush1.xpose.msra.mxu0 0.0
    %276 = vmatprep.subr.mxu0 0.0
    %277 = vmatpush1.xpose.msra.mxu0 0.0
    %278 = vmatprep.subr.mxu0 0.0
    %279 = vmatpush1.xpose.msra.mxu0 0.0
    %280 = vmatprep.subr.mxu0 0.0
    %281 = vmatpush1.xpose.msra.mxu0 0.0
    %282 = vmatprep.subr.mxu0 0.0
    %283 = vmatpush1.xpose.msra.mxu0 0.0
    %284 = vmatprep.subr.mxu0 0.0
    %285 = vmatpush1.xpose.msra.mxu0 0.0
    %286 = vmatprep.subr.mxu0 0.0
    %287 = vmatpush1.xpose.msra.mxu0 0.0
    %288 = vmatprep.subr.mxu0 0.0
    %289 = vmatpush1.xpose.msra.mxu0 0.0
    %290 = vmatprep.subr.mxu0 0.0
    %291 = vmatpush1.xpose.msra.mxu0 0.0
    %292 = vmatprep.subr.mxu0 0.0
    %293 = vmatpush1.xpose.msra.mxu0 0.0
    %294 = vmatprep.subr.mxu0 0.0
    %295 = vmatpush1.xpose.msra.mxu0 0.0
    %296 = vmatprep.subr.mxu0 0.0
    %297 = vmatpush1.xpose.msra.mxu0 0.0
    %298 = vmatprep.subr.mxu0 0.0
    %299 = vmatpush1.xpose.msra.mxu0 0.0
    %300 = vmatprep.subr.mxu0 0.0
    %301 = vmatpush1.xpose.msra.mxu0 0.0
    %302 = vmatprep.subr.mxu0 0.0
    %303 = vmatpush1.xpose.msra.mxu0 0.0
    %304 = vmatprep.subr.mxu0 0.0
    %305 = vmatpush1.xpose.msra.mxu0 0.0
    %306 = vmatprep.subr.mxu0 0.0
    %307 = vmatpush1.xpose.msra.mxu0 0.0
    %308 = vmatprep.subr.mxu0 0.0
    %309 = vmatpush1.xpose.msra.mxu0 0.0
    %310 = vmatprep.subr.mxu0 0.0
    %311 = vmatpush1.xpose.msra.mxu0 0.0
    %312 = vmatprep.subr.mxu0 0.0
    %313 = vmatpush1.xpose.msra.mxu0 0.0
    %314 = vmatprep.subr.mxu0 0.0
    %315 = vmatpush1.xpose.msra.mxu0 0.0
    %316 = vmatprep.subr.mxu0 0.0
    %317 = vmatpush1.xpose.msra.mxu0 0.0
    %318 = vmatprep.subr.mxu0 0.0
    %319 = vmatpush1.xpose.msra.mxu0 0.0
    %320 = vmatprep.subr.mxu0 0.0
    %321 = vmatpush1.xpose.msra.mxu0 0.0
    %322 = vmatprep.subr.mxu0 0.0
    %323 = vmatpush1.xpose.msra.mxu0 0.0
    %324 = vmatprep.subr.mxu0 0.0
    %325 = vmatpush1.xpose.msra.mxu0 0.0
    %326 = vmatprep.subr.mxu0 0.0
    %327 = vmatpush1.xpose.msra.mxu0 0.0
    %328 = vmatprep.mubr.f32.mxu0 0.0
    %329 = vmatmul.mubr.f32.gmra.mrb[0].mxu0 %v253
    %v330 = vpop.f32.mrb[0].mxu0
    %v331 = vadd.f32 %v248, %v330
    %v332 = vpop.f32.mrb[0].mxu0
    %333 = vmatprep.mubr.f32.mxu0 0.0
    %334 = vmatmul.mubr.f32.gmra.mrb[0].mxu0 %v256
    %v335 = vpop.f32.mrb[0].mxu0
    %v336 = vadd.f32 %v249, %v335
    %v337 = vpop.f32.mrb[0].mxu0
    %338 = vmatprep.mubr.f32.mxu0 0.0
    %339 = vmatmul.mubr.f32.gmra.mrb[0].mxu0 %v259
    %v340 = vpop.f32.mrb[0].mxu0
    %v341 = vadd.f32 %v250, %v340
    %v342 = vpop.f32.mrb[0].mxu0
    %343 = vmatprep.mubr.f32.mxu0 0.0
    %344 = vmatmul.mubr.f32.gmra.mrb[0].mxu0 %v262
    %v345 = vpop.f32.mrb[0].mxu0
    %v346 = vadd.f32 %v251, %v345
    %v347 = vpop.f32.mrb[0].mxu0
    %348 = vdwg.mxu0
    %v349 = vsel %vm150, %v331, -inf
    %350 = vmax.xlane.f32.xlu0 %v349
    %v351 = vpop.xlane.xlu0 %350
    %v352 = vsel %vm150, %v336, -inf
    %353 = vmax.xlane.f32.xlu0 %v352
    %v354 = vpop.xlane.xlu0 %353
    %v355 = vsel %vm150, %v341, -inf
    %356 = vmax.xlane.f32.xlu0 %v355
    %v357 = vpop.xlane.xlu0 %356
    %v358 = vsel %vm150, %v346, -inf
    %359 = vmax.xlane.f32.xlu0 %v358
    %v360 = vpop.xlane.xlu0 %359
    %v361 = vsub.f32 %v331, %v351
    %v362 = vsub.f32 %v336, %v354
    %v363 = vsub.f32 %v341, %v357
    %v364 = vsub.f32 %v346, %v360
    %v365 = vmul.f32 %v361, 1.442695
    %v366 = vpow.pop %v365
    %v367 = vmul.f32 %v362, 1.442695
    %v368 = vpow.pop %v367
    %v369 = vmul.f32 %v363, 1.442695
    %v370 = vpow.pop %v369
    %v371 = vmul.f32 %v364, 1.442695
    %v372 = vpow.pop %v371
    %v373 = vsel %vm150, %v366, 0.0
    %374 = vadd.xlane.f32.xlu0 %v373
    %v375 = vpop.xlane.xlu0 %374
    %v376 = vsel %vm150, %v368, 0.0
    %377 = vadd.xlane.f32.xlu0 %v376
    %v378 = vpop.xlane.xlu0 %377
    %v379 = vsel %vm150, %v370, 0.0
    %380 = vadd.xlane.f32.xlu0 %v379
    %v381 = vpop.xlane.xlu0 %380
    %v382 = vsel %vm150, %v372, 0.0
    %383 = vadd.xlane.f32.xlu0 %v382
    %v384 = vpop.xlane.xlu0 %383
    %v385 = vrcp.pop %v375
    %v386 = vrcp.pop %v378
    %v387 = vrcp.pop %v381
    %v388 = vrcp.pop %v384
    %v390 = vsel %vm150, %v366, 0
    %v393 = vsel %vm150, %v368, 0
    %v396 = vsel %vm150, %v370, 0
    %v399 = vsel %vm150, %v372, 0
    %401 = vmatprep.subr.mxu0 0.0
    %402 = vmatpush1.msra.mxu0 %v132
    %403 = vmatprep.subr.mxu0 0.0
    %404 = vmatpush1.msra.mxu0 %v137
    %405 = vmatprep.subr.mxu0 0.0
    %406 = vmatpush1.msra.mxu0 %v142
    %407 = vmatprep.subr.mxu0 0.0
    %408 = vmatpush1.msra.mxu0 %v147
    %409 = vmatprep.subr.mxu0 0.0
    %410 = vmatpush1.msra.mxu0 0.0
    %411 = vmatprep.subr.mxu0 0.0
    %412 = vmatpush1.msra.mxu0 0.0
    %413 = vmatprep.subr.mxu0 0.0
    %414 = vmatpush1.msra.mxu0 0.0
    %415 = vmatprep.subr.mxu0 0.0
    %416 = vmatpush1.msra.mxu0 0.0
    %417 = vmatprep.subr.mxu0 0.0
    %418 = vmatpush1.msra.mxu0 0.0
    %419 = vmatprep.subr.mxu0 0.0
    %420 = vmatpush1.msra.mxu0 0.0
    %421 = vmatprep.subr.mxu0 0.0
    %422 = vmatpush1.msra.mxu0 0.0
    %423 = vmatprep.subr.mxu0 0.0
    %424 = vmatpush1.msra.mxu0 0.0
    %425 = vmatprep.subr.mxu0 0.0
    %426 = vmatpush1.msra.mxu0 0.0
    %427 = vmatprep.subr.mxu0 0.0
    %428 = vmatpush1.msra.mxu0 0.0
    %429 = vmatprep.subr.mxu0 0.0
    %430 = vmatpush1.msra.mxu0 0.0
    %431 = vmatprep.subr.mxu0 0.0
    %432 = vmatpush1.msra.mxu0 0.0
    %433 = vmatprep.subr.mxu0 0.0
    %434 = vmatpush1.msra.mxu0 0.0
    %435 = vmatprep.subr.mxu0 0.0
    %436 = vmatpush1.msra.mxu0 0.0
    %437 = vmatprep.subr.mxu0 0.0
    %438 = vmatpush1.msra.mxu0 0.0
    %439 = vmatprep.subr.mxu0 0.0
    %440 = vmatpush1.msra.mxu0 0.0
    %441 = vmatprep.subr.mxu0 0.0
    %442 = vmatpush1.msra.mxu0 0.0
    %443 = vmatprep.subr.mxu0 0.0
    %444 = vmatpush1.msra.mxu0 0.0
    %445 = vmatprep.subr.mxu0 0.0
    %446 = vmatpush1.msra.mxu0 0.0
    %447 = vmatprep.subr.mxu0 0.0
    %448 = vmatpush1.msra.mxu0 0.0
    %449 = vmatprep.subr.mxu0 0.0
    %450 = vmatpush1.msra.mxu0 0.0
    %451 = vmatprep.subr.mxu0 0.0
    %452 = vmatpush1.msra.mxu0 0.0
    %453 = vmatprep.subr.mxu0 0.0
    %454 = vmatpush1.msra.mxu0 0.0
    %455 = vmatprep.subr.mxu0 0.0
    %456 = vmatpush1.msra.mxu0 0.0
    %457 = vmatprep.subr.mxu0 0.0
    %458 = vmatpush1.msra.mxu0 0.0
    %459 = vmatprep.subr.mxu0 0.0
    %460 = vmatpush1.msra.mxu0 0.0
    %461 = vmatprep.subr.mxu0 0.0
    %462 = vmatpush1.msra.mxu0 0.0
    %463 = vmatprep.subr.mxu0 0.0
    %464 = vmatpush1.msra.mxu0 0.0
    %465 = vmatprep.mubr.f32.mxu0 0.0
    %466 = vmatmul.mubr.f32.gmra.mrb[0].mxu0 %v390
    %v467 = vpop.f32.mrb[0].mxu0
    %v468 = vadd.f32 0.0, %v467
    %v469 = vpop.f32.mrb[0].mxu0
    %470 = vmatprep.mubr.f32.mxu0 0.0
    %471 = vmatmul.mubr.f32.gmra.mrb[0].mxu0 %v393
    %v472 = vpop.f32.mrb[0].mxu0
    %v473 = vadd.f32 0.0, %v472
    %v474 = vpop.f32.mrb[0].mxu0
    %475 = vmatprep.mubr.f32.mxu0 0.0
    %476 = vmatmul.mubr.f32.gmra.mrb[0].mxu0 %v396
    %v477 = vpop.f32.mrb[0].mxu0
    %v478 = vadd.f32 0.0, %v477
    %v479 = vpop.f32.mrb[0].mxu0
    %480 = vmatprep.mubr.f32.mxu0 0.0
    %481 = vmatmul.mubr.f32.gmra.mrb[0].mxu0 %v399
    %v482 = vpop.f32.mrb[0].mxu0
    %v483 = vadd.f32 0.0, %v482
    %v484 = vpop.f32.mrb[0].mxu0
    %485 = vdwg.mxu0
    %v486 = vmul.f32 %v468, %v385
    %v487 = vmul.f32 %v473, %v386
    %v488 = vmul.f32 %v478, %v387
    %v489 = vmul.f32 %v483, %v388
    %494 = vrot.lane.b32.xlu0 %v33, 96
    %v495 = vpop.permute.xlu0 %494
    %496 = vrot.lane.b32.xlu0 %v34, 96
    %v497 = vpop.permute.xlu0 %496
    %498 = vrot.lane.b32.xlu0 %v35, 96
    %v499 = vpop.permute.xlu0 %498
    %500 = vrot.lane.b32.xlu0 %v36, 96
    %v501 = vpop.permute.xlu0 %500
    %v507 = vsel %vm150, %v486, 0
    %v510 = vsel %vm150, %v487, 0
    %v513 = vsel %vm150, %v488, 0
    %v516 = vsel %vm150, %v489, 0
    %518 = vmatprep.subr.mxu0 0.0
    %519 = vmatpush1.msra.mxu0 %v495
    %520 = vmatprep.subr.mxu0 0.0
    %521 = vmatpush1.msra.mxu0 %v497
    %522 = vmatprep.subr.mxu0 0.0
    %523 = vmatpush1.msra.mxu0 %v499
    %524 = vmatprep.subr.mxu0 0.0
    %525 = vmatpush1.msra.mxu0 %v501
    %526 = vmatprep.subr.mxu0 0.0
    %527 = vmatpush1.msra.mxu0 0.0
    %528 = vmatprep.subr.mxu0 0.0
    %529 = vmatpush1.msra.mxu0 0.0
    %530 = vmatprep.subr.mxu0 0.0
    %531 = vmatpush1.msra.mxu0 0.0
    %532 = vmatprep.subr.mxu0 0.0
    %533 = vmatpush1.msra.mxu0 0.0
    %534 = vmatprep.subr.mxu0 0.0
    %535 = vmatpush1.msra.mxu0 0.0
    %536 = vmatprep.subr.mxu0 0.0
    %537 = vmatpush1.msra.mxu0 0.0
    %538 = vmatprep.subr.mxu0 0.0
    %539 = vmatpush1.msra.mxu0 0.0
    %540 = vmatprep.subr.mxu0 0.0
    %541 = vmatpush1.msra.mxu0 0.0
    %542 = vmatprep.subr.mxu0 0.0
    %543 = vmatpush1.msra.mxu0 0.0
    %544 = vmatprep.subr.mxu0 0.0
    %545 = vmatpush1.msra.mxu0 0.0
    %546 = vmatprep.subr.mxu0 0.0
    %547 = vmatpush1.msra.mxu0 0.0
    %548 = vmatprep.subr.mxu0 0.0
    %549 = vmatpush1.msra.mxu0 0.0
    %550 = vmatprep.subr.mxu0 0.0
    %551 = vmatpush1.msra.mxu0 0.0
    %552 = vmatprep.subr.mxu0 0.0
    %553 = vmatpush1.msra.mxu0 0.0
    %554 = vmatprep.subr.mxu0 0.0
    %555 = vmatpush1.msra.mxu0 0.0
    %556 = vmatprep.subr.mxu0 0.0
    %557 = vmatpush1.msra.mxu0 0.0
    %558 = vmatprep.subr.mxu0 0.0
    %559 = vmatpush1.msra.mxu0 0.0
    %560 = vmatprep.subr.mxu0 0.0
    %561 = vmatpush1.msra.mxu0 0.0
    %562 = vmatprep.subr.mxu0 0.0
    %563 = vmatpush1.msra.mxu0 0.0
    %564 = vmatprep.subr.mxu0 0.0
    %565 = vmatpush1.msra.mxu0 0.0
    %566 = vmatprep.subr.mxu0 0.0
    %567 = vmatpush1.msra.mxu0 0.0
    %568 = vmatprep.subr.mxu0 0.0
    %569 = vmatpush1.msra.mxu0 0.0
    %570 = vmatprep.subr.mxu0 0.0
    %571 = vmatpush1.msra.mxu0 0.0
    %572 = vmatprep.subr.mxu0 0.0
    %573 = vmatpush1.msra.mxu0 0.0
    %574 = vmatprep.subr.mxu0 0.0
    %575 = vmatpush1.msra.mxu0 0.0
    %576 = vmatprep.subr.mxu0 0.0
    %577 = vmatpush1.msra.mxu0 0.0
    %578 = vmatprep.subr.mxu0 0.0
    %579 = vmatpush1.msra.mxu0 0.0
    %580 = vmatprep.subr.mxu0 0.0
    %581 = vmatpush1.msra.mxu0 0.0
    %582 = vmatprep.mubr.f32.mxu0 0.0
    %583 = vmatmul.mubr.f32.gmra.mrb[0].mxu0 %v507
    %v584 = vpop.f32.mrb[0].mxu0
    %v585 = vadd.f32 0.0, %v584
    %v586 = vpop.f32.mrb[0].mxu0
    %587 = vmatprep.mubr.f32.mxu0 0.0
    %588 = vmatmul.mubr.f32.gmra.mrb[0].mxu0 %v510
    %v589 = vpop.f32.mrb[0].mxu0
    %v590 = vadd.f32 0.0, %v589
    %v591 = vpop.f32.mrb[0].mxu0
    %592 = vmatprep.mubr.f32.mxu0 0.0
    %593 = vmatmul.mubr.f32.gmra.mrb[0].mxu0 %v513
    %v594 = vpop.f32.mrb[0].mxu0
    %v595 = vadd.f32 0.0, %v594
    %v596 = vpop.f32.mrb[0].mxu0
    %597 = vmatprep.mubr.f32.mxu0 0.0
    %598 = vmatmul.mubr.f32.gmra.mrb[0].mxu0 %v516
    %v599 = vpop.f32.mrb[0].mxu0
    %v600 = vadd.f32 0.0, %v599
    %v601 = vpop.f32.mrb[0].mxu0
    %602 = vdwg.mxu0
    %v603 = vadd.f32 %v132, %v585
    %v604 = vadd.f32 %v137, %v590
    %v605 = vadd.f32 %v142, %v595
    %v606 = vadd.f32 %v147, %v600
    %v607 = vsel %vm150, %v603, 0.0
    %608 = vadd.xlane.f32.xlu0 %v607
    %v609 = vpop.xlane.xlu0 %608
    %v610 = vsel %vm150, %v604, 0.0
    %611 = vadd.xlane.f32.xlu0 %v610
    %v612 = vpop.xlane.xlu0 %611
    %v613 = vsel %vm150, %v605, 0.0
    %614 = vadd.xlane.f32.xlu0 %v613
    %v615 = vpop.xlane.xlu0 %614
    %v616 = vsel %vm150, %v606, 0.0
    %617 = vadd.xlane.f32.xlu0 %v616
    %v618 = vpop.xlane.xlu0 %617
    %v619 = vrcp.pop 32.0
    %v620 = vmul.f32 %v609, %v619
    %v621 = vmul.f32 %v612, %v619
    %v622 = vmul.f32 %v615, %v619
    %v623 = vmul.f32 %v618, %v619
    %v624 = vsub.f32 %v603, %v620
    %v625 = vsub.f32 %v604, %v621
    %v626 = vsub.f32 %v605, %v622
    %v627 = vsub.f32 %v606, %v623
    %v628 = vmul.f32 %v624, %v624
    %v629 = vmul.f32 %v625, %v625
    %v630 = vmul.f32 %v626, %v626
    %v631 = vmul.f32 %v627, %v627
    %v632 = vsel %vm150, %v628, 0.0
    %633 = vadd.xlane.f32.xlu0 %v632
    %v634 = vpop.xlane.xlu0 %633
    %v635 = vsel %vm150, %v629, 0.0
    %636 = vadd.xlane.f32.xlu0 %v635
    %v637 = vpop.xlane.xlu0 %636
    %v638 = vsel %vm150, %v630, 0.0
    %639 = vadd.xlane.f32.xlu0 %v638
    %v640 = vpop.xlane.xlu0 %639
    %v641 = vsel %vm150, %v631, 0.0
    %642 = vadd.xlane.f32.xlu0 %v641
    %v643 = vpop.xlane.xlu0 %642
    %v644 = vmul.f32 %v634, %v619
    %v645 = vmul.f32 %v637, %v619
    %v646 = vmul.f32 %v640, %v619
    %v647 = vmul.f32 %v643, %v619
    %v648 = vadd.f32 %v644, 1e-05
    %v649 = vadd.f32 %v645, 1e-05
    %v650 = vadd.f32 %v646, 1e-05
    %v651 = vadd.f32 %v647, 1e-05
    %v652 = vrsqrt.pop %v648
    %v653 = vrsqrt.pop %v649
    %v654 = vrsqrt.pop %v650
    %v655 = vrsqrt.pop %v651
    %v656 = vmul.f32 %v624, %v652
    %v657 = vmul.f32 %v625, %v653
    %v658 = vmul.f32 %v626, %v654
    %v659 = vmul.f32 %v627, %v655
    %v660 = vlaneseq
    %v661 = vshrl.u32 %v660, 7
    %v662 = vsub.s32 0, %v661
    %v663 = vrot.slane %v37, %v662
    %v664 = vmul.f32 %v656, %v663
    %v665 = vmul.f32 %v657, %v663
    %v666 = vmul.f32 %v658, %v663
    %v667 = vmul.f32 %v659, %v663
    %v668 = vlaneseq
    %v669 = vshrl.u32 %v668, 7
    %v670 = vsub.s32 1, %v669
    %v671 = vrot.slane %v37, %v670
    %v672 = vadd.f32 %v664, %v671
    %v673 = vadd.f32 %v665, %v671
    %v674 = vadd.f32 %v666, %v671
    %v675 = vadd.f32 %v667, %v671
    %v676 = vlaneseq
    %v677 = vshrl.u32 %v676, 7
    %v678 = vsub.s32 5, %v677
    %v679 = vrot.slane %v37, %v678
    %680 = vrot.lane.b32.xlu0 %v33, 64
    %v681 = vpop.permute.xlu0 %680
    %682 = vrot.lane.b32.xlu0 %v34, 64
    %v683 = vpop.permute.xlu0 %682
    %684 = vrot.lane.b32.xlu0 %v35, 64
    %v685 = vpop.permute.xlu0 %684
    %686 = vrot.lane.b32.xlu0 %v36, 64
    %v687 = vpop.permute.xlu0 %686
    %v693 = vsel %vm150, %v672, 0
    %v696 = vsel %vm150, %v673, 0
    %v699 = vsel %vm150, %v674, 0
    %v702 = vsel %vm150, %v675, 0
    %704 = vmatprep.subr.mxu0 0.0
    %705 = vmatpush1.msra.mxu0 %v681
    %706 = vmatprep.subr.mxu0 0.0
    %707 = vmatpush1.msra.mxu0 %v683
    %708 = vmatprep.subr.mxu0 0.0
    %709 = vmatpush1.msra.mxu0 %v685
    %710 = vmatprep.subr.mxu0 0.0
    %711 = vmatpush1.msra.mxu0 %v687
    %712 = vmatprep.subr.mxu0 0.0
    %713 = vmatpush1.msra.mxu0 0.0
    %714 = vmatprep.subr.mxu0 0.0
    %715 = vmatpush1.msra.mxu0 0.0
    %716 = vmatprep.subr.mxu0 0.0
    %717 = vmatpush1.msra.mxu0 0.0
    %718 = vmatprep.subr.mxu0 0.0
    %719 = vmatpush1.msra.mxu0 0.0
    %720 = vmatprep.subr.mxu0 0.0
    %721 = vmatpush1.msra.mxu0 0.0
    %722 = vmatprep.subr.mxu0 0.0
    %723 = vmatpush1.msra.mxu0 0.0
    %724 = vmatprep.subr.mxu0 0.0
    %725 = vmatpush1.msra.mxu0 0.0
    %726 = vmatprep.subr.mxu0 0.0
    %727 = vmatpush1.msra.mxu0 0.0
    %728 = vmatprep.subr.mxu0 0.0
    %729 = vmatpush1.msra.mxu0 0.0
    %730 = vmatprep.subr.mxu0 0.0
    %731 = vmatpush1.msra.mxu0 0.0
    %732 = vmatprep.subr.mxu0 0.0
    %733 = vmatpush1.msra.mxu0 0.0
    %734 = vmatprep.subr.mxu0 0.0
    %735 = vmatpush1.msra.mxu0 0.0
    %736 = vmatprep.subr.mxu0 0.0
    %737 = vmatpush1.msra.mxu0 0.0
    %738 = vmatprep.subr.mxu0 0.0
    %739 = vmatpush1.msra.mxu0 0.0
    %740 = vmatprep.subr.mxu0 0.0
    %741 = vmatpush1.msra.mxu0 0.0
    %742 = vmatprep.subr.mxu0 0.0
    %743 = vmatpush1.msra.mxu0 0.0
    %744 = vmatprep.subr.mxu0 0.0
    %745 = vmatpush1.msra.mxu0 0.0
    %746 = vmatprep.subr.mxu0 0.0
    %747 = vmatpush1.msra.mxu0 0.0
    %748 = vmatprep.subr.mxu0 0.0
    %749 = vmatpush1.msra.mxu0 0.0
    %750 = vmatprep.subr.mxu0 0.0
    %751 = vmatpush1.msra.mxu0 0.0
    %752 = vmatprep.subr.mxu0 0.0
    %753 = vmatpush1.msra.mxu0 0.0
    %754 = vmatprep.subr.mxu0 0.0
    %755 = vmatpush1.msra.mxu0 0.0
    %756 = vmatprep.subr.mxu0 0.0
    %757 = vmatpush1.msra.mxu0 0.0
    %758 = vmatprep.subr.mxu0 0.0
    %759 = vmatpush1.msra.mxu0 0.0
    %760 = vmatprep.subr.mxu0 0.0
    %761 = vmatpush1.msra.mxu0 0.0
    %762 = vmatprep.subr.mxu0 0.0
    %763 = vmatpush1.msra.mxu0 0.0
    %764 = vmatprep.subr.mxu0 0.0
    %765 = vmatpush1.msra.mxu0 0.0
    %766 = vmatprep.subr.mxu0 0.0
    %767 = vmatpush1.msra.mxu0 0.0
    %768 = vmatprep.mubr.f32.mxu0 0.0
    %769 = vmatmul.mubr.f32.gmra.mrb[0].mxu0 %v693
    %v770 = vpop.f32.mrb[0].mxu0
    %v771 = vadd.f32 %v679, %v770
    %v772 = vpop.f32.mrb[0].mxu0
    %773 = vmatprep.mubr.f32.mxu0 0.0
    %774 = vmatmul.mubr.f32.gmra.mrb[0].mxu0 %v696
    %v775 = vpop.f32.mrb[0].mxu0
    %v776 = vadd.f32 %v679, %v775
    %v777 = vpop.f32.mrb[0].mxu0
    %778 = vmatprep.mubr.f32.mxu0 0.0
    %779 = vmatmul.mubr.f32.gmra.mrb[0].mxu0 %v699
    %v780 = vpop.f32.mrb[0].mxu0
    %v781 = vadd.f32 %v679, %v780
    %v782 = vpop.f32.mrb[0].mxu0
    %783 = vmatprep.mubr.f32.mxu0 0.0
    %784 = vmatmul.mubr.f32.gmra.mrb[0].mxu0 %v702
    %v785 = vpop.f32.mrb[0].mxu0
    %v786 = vadd.f32 %v679, %v785
    %v787 = vpop.f32.mrb[0].mxu0
    %788 = vdwg.mxu0
    %v789 = vmax.f32 %v771, 0.0
    %v790 = vmax.f32 %v776, 0.0
    %v791 = vmax.f32 %v781, 0.0
    %v792 = vmax.f32 %v786, 0.0
    %v793 = vld [vmem:[%s5] sm:$0xff]
    %v794 = vld [vmem:[%s5 + $0x8] sm:$0xff]
    %v795 = vld [vmem:[%s5 + $0x10] sm:$0xff]
    %v796 = vld [vmem:[%s5 + $0x18] sm:$0xff]
    %v797 = vld [vmem:[%s5 + $0x20] sm:$0xff]
    %v798 = vld [vmem:[%s5 + $0x28] sm:$0xff]
    %v799 = vld [vmem:[%s5 + $0x30] sm:$0xff]
    %v800 = vld [vmem:[%s5 + $0x38] sm:$0xff]
    %vm801 = vcmask 523264
    %v803 = vsel %vm801, %v789, 0
    %v806 = vsel %vm801, %v790, 0
    %v809 = vsel %vm801, %v791, 0
    %v812 = vsel %vm801, %v792, 0
    %814 = vmatprep.subr.mxu0 0.0
    %815 = vmatpush1.msra.mxu0 %v793
    %816 = vmatprep.subr.mxu0 0.0
    %817 = vmatpush1.msra.mxu0 %v794
    %818 = vmatprep.subr.mxu0 0.0
    %819 = vmatpush1.msra.mxu0 %v795
    %820 = vmatprep.subr.mxu0 0.0
    %821 = vmatpush1.msra.mxu0 %v796
    %822 = vmatprep.subr.mxu0 0.0
    %823 = vmatpush1.msra.mxu0 %v797
    %824 = vmatprep.subr.mxu0 0.0
    %825 = vmatpush1.msra.mxu0 %v798
    %826 = vmatprep.subr.mxu0 0.0
    %827 = vmatpush1.msra.mxu0 %v799
    %828 = vmatprep.subr.mxu0 0.0
    %829 = vmatpush1.msra.mxu0 %v800
    %830 = vmatprep.subr.mxu0 0.0
    %831 = vmatpush1.msra.mxu0 0.0
    %832 = vmatprep.subr.mxu0 0.0
    %833 = vmatpush1.msra.mxu0 0.0
    %834 = vmatprep.subr.mxu0 0.0
    %835 = vmatpush1.msra.mxu0 0.0
    %836 = vmatprep.subr.mxu0 0.0
    %837 = vmatpush1.msra.mxu0 0.0
    %838 = vmatprep.subr.mxu0 0.0
    %839 = vmatpush1.msra.mxu0 0.0
    %840 = vmatprep.subr.mxu0 0.0
    %841 = vmatpush1.msra.mxu0 0.0
    %842 = vmatprep.subr.mxu0 0.0
    %843 = vmatpush1.msra.mxu0 0.0
    %844 = vmatprep.subr.mxu0 0.0
    %845 = vmatpush1.msra.mxu0 0.0
    %846 = vmatprep.subr.mxu0 0.0
    %847 = vmatpush1.msra.mxu0 0.0
    %848 = vmatprep.subr.mxu0 0.0
    %849 = vmatpush1.msra.mxu0 0.0
    %850 = vmatprep.subr.mxu0 0.0
    %851 = vmatpush1.msra.mxu0 0.0
    %852 = vmatprep.subr.mxu0 0.0
    %853 = vmatpush1.msra.mxu0 0.0
    %854 = vmatprep.subr.mxu0 0.0
    %855 = vmatpush1.msra.mxu0 0.0
    %856 = vmatprep.subr.mxu0 0.0
    %857 = vmatpush1.msra.mxu0 0.0
    %858 = vmatprep.subr.mxu0 0.0
    %859 = vmatpush1.msra.mxu0 0.0
    %860 = vmatprep.subr.mxu0 0.0
    %861 = vmatpush1.msra.mxu0 0.0
    %862 = vmatprep.subr.mxu0 0.0
    %863 = vmatpush1.msra.mxu0 0.0
    %864 = vmatprep.subr.mxu0 0.0
    %865 = vmatpush1.msra.mxu0 0.0
    %866 = vmatprep.subr.mxu0 0.0
    %867 = vmatpush1.msra.mxu0 0.0
    %868 = vmatprep.subr.mxu0 0.0
    %869 = vmatpush1.msra.mxu0 0.0
    %870 = vmatprep.subr.mxu0 0.0
    %871 = vmatpush1.msra.mxu0 0.0
    %872 = vmatprep.subr.mxu0 0.0
    %873 = vmatpush1.msra.mxu0 0.0
    %874 = vmatprep.subr.mxu0 0.0
    %875 = vmatpush1.msra.mxu0 0.0
    %876 = vmatprep.subr.mxu0 0.0
    %877 = vmatpush1.msra.mxu0 0.0
    %878 = vmatprep.mubr.f32.mxu0 0.0
    %879 = vmatmul.mubr.f32.gmra.mrb[0].mxu0 %v803
    %v880 = vpop.f32.mrb[0].mxu0
    %v881 = vadd.f32 0.0, %v880
    %v882 = vpop.f32.mrb[0].mxu0
    %883 = vmatprep.mubr.f32.mxu0 0.0
    %884 = vmatmul.mubr.f32.gmra.mrb[0].mxu0 %v806
    %v885 = vpop.f32.mrb[0].mxu0
    %v886 = vadd.f32 0.0, %v885
    %v887 = vpop.f32.mrb[0].mxu0
    %888 = vmatprep.mubr.f32.mxu0 0.0
    %889 = vmatmul.mubr.f32.gmra.mrb[0].mxu0 %v809
    %v890 = vpop.f32.mrb[0].mxu0
    %v891 = vadd.f32 0.0, %v890
    %v892 = vpop.f32.mrb[0].mxu0
    %893 = vmatprep.mubr.f32.mxu0 0.0
    %894 = vmatmul.mubr.f32.gmra.mrb[0].mxu0 %v812
    %v895 = vpop.f32.mrb[0].mxu0
    %v896 = vadd.f32 0.0, %v895
    %v897 = vpop.f32.mrb[0].mxu0
    %898 = vdwg.mxu0
    %v899 = vadd.f32 %v672, %v881
    %v900 = vadd.f32 %v673, %v886
    %v901 = vadd.f32 %v674, %v891
    %v902 = vadd.f32 %v675, %v896
    %v903 = vlaneseq
    %v904 = vshrl.u32 %v903, 7
    %v905 = vsub.s32 4, %v904
    %v906 = vrot.slane %v37, %v905
    %v907 = vadd.f32 %v899, %v906
    %v908 = vadd.f32 %v900, %v906
    %v909 = vadd.f32 %v901, %v906
    %v910 = vadd.f32 %v902, %v906
    %v911 = vsel %vm150, %v907, 0.0
    %912 = vadd.xlane.f32.xlu0 %v911
    %v913 = vpop.xlane.xlu0 %912
    %v914 = vsel %vm150, %v908, 0.0
    %915 = vadd.xlane.f32.xlu0 %v914
    %v916 = vpop.xlane.xlu0 %915
    %v917 = vsel %vm150, %v909, 0.0
    %918 = vadd.xlane.f32.xlu0 %v917
    %v919 = vpop.xlane.xlu0 %918
    %v920 = vsel %vm150, %v910, 0.0
    %921 = vadd.xlane.f32.xlu0 %v920
    %v922 = vpop.xlane.xlu0 %921
    %v923 = vmul.f32 %v913, %v619
    %v924 = vmul.f32 %v916, %v619
    %v925 = vmul.f32 %v919, %v619
    %v926 = vmul.f32 %v922, %v619
    %v927 = vsub.f32 %v907, %v923
    %v928 = vsub.f32 %v908, %v924
    %v929 = vsub.f32 %v909, %v925
    %v930 = vsub.f32 %v910, %v926
    %v931 = vmul.f32 %v927, %v927
    %v932 = vmul.f32 %v928, %v928
    %v933 = vmul.f32 %v929, %v929
    %v934 = vmul.f32 %v930, %v930
    %v935 = vsel %vm150, %v931, 0.0
    %936 = vadd.xlane.f32.xlu0 %v935
    %v937 = vpop.xlane.xlu0 %936
    %v938 = vsel %vm150, %v932, 0.0
    %939 = vadd.xlane.f32.xlu0 %v938
    %v940 = vpop.xlane.xlu0 %939
    %v941 = vsel %vm150, %v933, 0.0
    %942 = vadd.xlane.f32.xlu0 %v941
    %v943 = vpop.xlane.xlu0 %942
    %v944 = vsel %vm150, %v934, 0.0
    %945 = vadd.xlane.f32.xlu0 %v944
    %v946 = vpop.xlane.xlu0 %945
    %v947 = vmul.f32 %v937, %v619
    %v948 = vmul.f32 %v940, %v619
    %v949 = vmul.f32 %v943, %v619
    %v950 = vmul.f32 %v946, %v619
    %v951 = vadd.f32 %v947, 1e-05
    %v952 = vadd.f32 %v948, 1e-05
    %v953 = vadd.f32 %v949, 1e-05
    %v954 = vadd.f32 %v950, 1e-05
    %v955 = vrsqrt.pop %v951
    %v956 = vrsqrt.pop %v952
    %v957 = vrsqrt.pop %v953
    %v958 = vrsqrt.pop %v954
    %v959 = vmul.f32 %v927, %v955
    %v960 = vmul.f32 %v928, %v956
    %v961 = vmul.f32 %v929, %v957
    %v962 = vmul.f32 %v930, %v958
    %v963 = vlaneseq
    %v964 = vshrl.u32 %v963, 7
    %v965 = vsub.s32 2, %v964
    %v966 = vrot.slane %v37, %v965
    %v967 = vmul.f32 %v959, %v966
    %v968 = vmul.f32 %v960, %v966
    %v969 = vmul.f32 %v961, %v966
    %v970 = vmul.f32 %v962, %v966
    %v971 = vlaneseq
    %v972 = vshrl.u32 %v971, 7
    %v973 = vsub.s32 3, %v972
    %v974 = vrot.slane %v37, %v973
    %v975 = vadd.f32 %v967, %v974
    %v976 = vadd.f32 %v968, %v974
    %v977 = vadd.f32 %v969, %v974
    %v978 = vadd.f32 %v970, %v974
    %v979 = vld [vmem:[%s6] sm:$0xff]
    %v980 = vld [vmem:[%s6 + $0x8] sm:$0xff]
    %v981 = vld [vmem:[%s6 + $0x10] sm:$0xff]
    %v982 = vld [vmem:[%s6 + $0x18] sm:$0xff]
    %v983 = vld [vmem:[%s6 + $0x20] sm:$0xff]
    %v984 = vld [vmem:[%s6 + $0x28] sm:$0xff]
    %v986 = vsel %vm150, %v979, 0
    %v989 = vsel %vm150, %v980, 0
    %v992 = vsel %vm150, %v981, 0
    %v995 = vsel %vm150, %v982, 0
    %v998 = vsel %vm150, %v983, 0
    %v1001 = vsel %vm150, %v984, 0
    %1003 = vmatprep.subr.mxu0 0.0
    %1004 = vmatpush1.msra.mxu0 %v975
    %1005 = vmatprep.subr.mxu0 0.0
    %1006 = vmatpush1.msra.mxu0 %v976
    %1007 = vmatprep.subr.mxu0 0.0
    %1008 = vmatpush1.msra.mxu0 %v977
    %1009 = vmatprep.subr.mxu0 0.0
    %1010 = vmatpush1.msra.mxu0 %v978
    %1011 = vmatprep.subr.mxu0 0.0
    %1012 = vmatpush1.msra.mxu0 0.0
    %1013 = vmatprep.subr.mxu0 0.0
    %1014 = vmatpush1.msra.mxu0 0.0
    %1015 = vmatprep.subr.mxu0 0.0
    %1016 = vmatpush1.msra.mxu0 0.0
    %1017 = vmatprep.subr.mxu0 0.0
    %1018 = vmatpush1.msra.mxu0 0.0
    %1019 = vmatprep.subr.mxu0 0.0
    %1020 = vmatpush1.msra.mxu0 0.0
    %1021 = vmatprep.subr.mxu0 0.0
    %1022 = vmatpush1.msra.mxu0 0.0
    %1023 = vmatprep.subr.mxu0 0.0
    %1024 = vmatpush1.msra.mxu0 0.0
    %1025 = vmatprep.subr.mxu0 0.0
    %1026 = vmatpush1.msra.mxu0 0.0
    %1027 = vmatprep.subr.mxu0 0.0
    %1028 = vmatpush1.msra.mxu0 0.0
    %1029 = vmatprep.subr.mxu0 0.0
    %1030 = vmatpush1.msra.mxu0 0.0
    %1031 = vmatprep.subr.mxu0 0.0
    %1032 = vmatpush1.msra.mxu0 0.0
    %1033 = vmatprep.subr.mxu0 0.0
    %1034 = vmatpush1.msra.mxu0 0.0
    %1035 = vmatprep.subr.mxu0 0.0
    %1036 = vmatpush1.msra.mxu0 0.0
    %1037 = vmatprep.subr.mxu0 0.0
    %1038 = vmatpush1.msra.mxu0 0.0
    %1039 = vmatprep.subr.mxu0 0.0
    %1040 = vmatpush1.msra.mxu0 0.0
    %1041 = vmatprep.subr.mxu0 0.0
    %1042 = vmatpush1.msra.mxu0 0.0
    %1043 = vmatprep.subr.mxu0 0.0
    %1044 = vmatpush1.msra.mxu0 0.0
    %1045 = vmatprep.subr.mxu0 0.0
    %1046 = vmatpush1.msra.mxu0 0.0
    %1047 = vmatprep.subr.mxu0 0.0
    %1048 = vmatpush1.msra.mxu0 0.0
    %1049 = vmatprep.subr.mxu0 0.0
    %1050 = vmatpush1.msra.mxu0 0.0
    %1051 = vmatprep.subr.mxu0 0.0
    %1052 = vmatpush1.msra.mxu0 0.0
    %1053 = vmatprep.subr.mxu0 0.0
    %1054 = vmatpush1.msra.mxu0 0.0
    %1055 = vmatprep.subr.mxu0 0.0
    %1056 = vmatpush1.msra.mxu0 0.0
    %1057 = vmatprep.subr.mxu0 0.0
    %1058 = vmatpush1.msra.mxu0 0.0
    %1059 = vmatprep.subr.mxu0 0.0
    %1060 = vmatpush1.msra.mxu0 0.0
    %1061 = vmatprep.subr.mxu0 0.0
    %1062 = vmatpush1.msra.mxu0 0.0
    %1063 = vmatprep.subr.mxu0 0.0
    %1064 = vmatpush1.msra.mxu0 0.0
    %1065 = vmatprep.subr.mxu0 0.0
    %1066 = vmatpush1.msra.mxu0 0.0
    %1067 = vmatprep.mubr.f32.mxu0 0.0
    %1068 = vmatmul.mubr.f32.gmra.mrb[0].mxu0 %v986
    %v1069 = vpop.f32.mrb[0].mxu0
    %v1070 = vadd.f32 0.0, %v1069
    %v1071 = vpop.f32.mrb[0].mxu0
    %1072 = vmatprep.mubr.f32.mxu0 0.0
    %1073 = vmatmul.mubr.f32.gmra.mrb[0].mxu0 %v989
    %v1074 = vpop.f32.mrb[0].mxu0
    %v1075 = vadd.f32 0.0, %v1074
    %v1076 = vpop.f32.mrb[0].mxu0
    %1077 = vmatprep.mubr.f32.mxu0 0.0
    %1078 = vmatmul.mubr.f32.gmra.mrb[0].mxu0 %v992
    %v1079 = vpop.f32.mrb[0].mxu0
    %v1080 = vadd.f32 0.0, %v1079
    %v1081 = vpop.f32.mrb[0].mxu0
    %1082 = vmatprep.mubr.f32.mxu0 0.0
    %1083 = vmatmul.mubr.f32.gmra.mrb[0].mxu0 %v995
    %v1084 = vpop.f32.mrb[0].mxu0
    %v1085 = vadd.f32 0.0, %v1084
    %v1086 = vpop.f32.mrb[0].mxu0
    %1087 = vmatprep.mubr.f32.mxu0 0.0
    %1088 = vmatmul.mubr.f32.gmra.mrb[0].mxu0 %v998
    %v1089 = vpop.f32.mrb[0].mxu0
    %v1090 = vadd.f32 0.0, %v1089
    %v1091 = vpop.f32.mrb[0].mxu0
    %1092 = vmatprep.mubr.f32.mxu0 0.0
    %1093 = vmatmul.mubr.f32.gmra.mrb[0].mxu0 %v1001
    %v1094 = vpop.f32.mrb[0].mxu0
    %v1095 = vadd.f32 0.0, %v1094
    %v1096 = vpop.f32.mrb[0].mxu0
    %1097 = vdwg.mxu0
    %v1098 = vld [vmem:[%s7] sm:$0xff]
    %v1099 = vld [vmem:[%s7 + $0x8] sm:$0xff]
    %v1100 = vld [vmem:[%s7 + $0x10] sm:$0xff]
    %v1101 = vld [vmem:[%s7 + $0x18] sm:$0xff]
    %v1102 = vlaneseq
    %v1103 = vshrl.u32 %v1102, 7
    %v1104 = vsub.s32 6, %v1103
    %v1105 = vrot.slane %v37, %v1104
    %v1107 = vsel %vm150, %v1070, 0
    %v1110 = vsel %vm150, %v1075, 0
    %v1113 = vsel %vm150, %v1080, 0
    %v1116 = vsel %vm150, %v1085, 0
    %v1119 = vsel %vm150, %v1090, 0
    %v1122 = vsel %vm150, %v1095, 0
    %1124 = vmatprep.subr.mxu0 0.0
    %1125 = vmatpush1.msra.mxu0 %v1098
    %1126 = vmatprep.subr.mxu0 0.0
    %1127 = vmatpush1.msra.mxu0 %v1099
    %1128 = vmatprep.subr.mxu0 0.0
    %1129 = vmatpush1.msra.mxu0 %v1100
    %1130 = vmatprep.subr.mxu0 0.0
    %1131 = vmatpush1.msra.mxu0 %v1101
    %1132 = vmatprep.subr.mxu0 0.0
    %1133 = vmatpush1.msra.mxu0 0.0
    %1134 = vmatprep.subr.mxu0 0.0
    %1135 = vmatpush1.msra.mxu0 0.0
    %1136 = vmatprep.subr.mxu0 0.0
    %1137 = vmatpush1.msra.mxu0 0.0
    %1138 = vmatprep.subr.mxu0 0.0
    %1139 = vmatpush1.msra.mxu0 0.0
    %1140 = vmatprep.subr.mxu0 0.0
    %1141 = vmatpush1.msra.mxu0 0.0
    %1142 = vmatprep.subr.mxu0 0.0
    %1143 = vmatpush1.msra.mxu0 0.0
    %1144 = vmatprep.subr.mxu0 0.0
    %1145 = vmatpush1.msra.mxu0 0.0
    %1146 = vmatprep.subr.mxu0 0.0
    %1147 = vmatpush1.msra.mxu0 0.0
    %1148 = vmatprep.subr.mxu0 0.0
    %1149 = vmatpush1.msra.mxu0 0.0
    %1150 = vmatprep.subr.mxu0 0.0
    %1151 = vmatpush1.msra.mxu0 0.0
    %1152 = vmatprep.subr.mxu0 0.0
    %1153 = vmatpush1.msra.mxu0 0.0
    %1154 = vmatprep.subr.mxu0 0.0
    %1155 = vmatpush1.msra.mxu0 0.0
    %1156 = vmatprep.subr.mxu0 0.0
    %1157 = vmatpush1.msra.mxu0 0.0
    %1158 = vmatprep.subr.mxu0 0.0
    %1159 = vmatpush1.msra.mxu0 0.0
    %1160 = vmatprep.subr.mxu0 0.0
    %1161 = vmatpush1.msra.mxu0 0.0
    %1162 = vmatprep.subr.mxu0 0.0
    %1163 = vmatpush1.msra.mxu0 0.0
    %1164 = vmatprep.subr.mxu0 0.0
    %1165 = vmatpush1.msra.mxu0 0.0
    %1166 = vmatprep.subr.mxu0 0.0
    %1167 = vmatpush1.msra.mxu0 0.0
    %1168 = vmatprep.subr.mxu0 0.0
    %1169 = vmatpush1.msra.mxu0 0.0
    %1170 = vmatprep.subr.mxu0 0.0
    %1171 = vmatpush1.msra.mxu0 0.0
    %1172 = vmatprep.subr.mxu0 0.0
    %1173 = vmatpush1.msra.mxu0 0.0
    %1174 = vmatprep.subr.mxu0 0.0
    %1175 = vmatpush1.msra.mxu0 0.0
    %1176 = vmatprep.subr.mxu0 0.0
    %1177 = vmatpush1.msra.mxu0 0.0
    %1178 = vmatprep.subr.mxu0 0.0
    %1179 = vmatpush1.msra.mxu0 0.0
    %1180 = vmatprep.subr.mxu0 0.0
    %1181 = vmatpush1.msra.mxu0 0.0
    %1182 = vmatprep.subr.mxu0 0.0
    %1183 = vmatpush1.msra.mxu0 0.0
    %1184 = vmatprep.subr.mxu0 0.0
    %1185 = vmatpush1.msra.mxu0 0.0
    %1186 = vmatprep.subr.mxu0 0.0
    %1187 = vmatpush1.msra.mxu0 0.0
    %1188 = vmatprep.mubr.f32.mxu0 0.0
    %1189 = vmatmul.mubr.f32.gmra.mrb[0].mxu0 %v1107
    %v1190 = vpop.f32.mrb[0].mxu0
    %v1191 = vadd.f32 %v1105, %v1190
    %v1192 = vpop.f32.mrb[0].mxu0
    %1193 = vmatprep.mubr.f32.mxu0 0.0
    %1194 = vmatmul.mubr.f32.gmra.mrb[0].mxu0 %v1110
    %v1195 = vpop.f32.mrb[0].mxu0
    %v1196 = vadd.f32 %v1105, %v1195
    %v1197 = vpop.f32.mrb[0].mxu0
    %1198 = vmatprep.mubr.f32.mxu0 0.0
    %1199 = vmatmul.mubr.f32.gmra.mrb[0].mxu0 %v1113
    %v1200 = vpop.f32.mrb[0].mxu0
    %v1201 = vadd.f32 %v1105, %v1200
    %v1202 = vpop.f32.mrb[0].mxu0
    %1203 = vmatprep.mubr.f32.mxu0 0.0
    %1204 = vmatmul.mubr.f32.gmra.mrb[0].mxu0 %v1116
    %v1205 = vpop.f32.mrb[0].mxu0
    %v1206 = vadd.f32 %v1105, %v1205
    %v1207 = vpop.f32.mrb[0].mxu0
    %1208 = vmatprep.mubr.f32.mxu0 0.0
    %1209 = vmatmul.mubr.f32.gmra.mrb[0].mxu0 %v1119
    %v1210 = vpop.f32.mrb[0].mxu0
    %v1211 = vadd.f32 %v1105, %v1210
    %v1212 = vpop.f32.mrb[0].mxu0
    %1213 = vmatprep.mubr.f32.mxu0 0.0
    %1214 = vmatmul.mubr.f32.gmra.mrb[0].mxu0 %v1122
    %v1215 = vpop.f32.mrb[0].mxu0
    %v1216 = vadd.f32 %v1105, %v1215
    %v1217 = vpop.f32.mrb[0].mxu0
    %1218 = vdwg.mxu0
    %1219 = vst [vmem:[#allocation2] sm:$0xff] %v1191
    %1220 = vst [vmem:[#allocation2 + $0x8] sm:$0xff] %v1196
    %1221 = vst [vmem:[#allocation2 + $0x10] sm:$0xff] %v1201
    %1222 = vst [vmem:[#allocation2 + $0x18] sm:$0xff] %v1206
    %1223 = vst [vmem:[#allocation2 + $0x20] sm:$0xff] %v1211
    %1224 = vst [vmem:[#allocation2 + $0x28] sm:$0xff] %v1216
    // Predicated region
    $region38: #{tpu_custom_call.1} parent=1 // pred_check
      _
    $region39: #{tpu_custom_call.1} parent=1 // pred_check_branch
      %1226 = sbr.rel (0) target = $region41
    $region40: #{tpu_custom_call.1} parent=1 // pred_region
      %s1228 = ssub.s32 768, 768
      %1229 = vsyncadd [#allocation3], %s1228
      %s1230 = sshll.u32 [#allocation2], 4
      %s1231 = int_to_ptr.vmem [resolvable:$true] %s1230
      %1236 = dma.vmem_to_hbm [thread:$0]  %s1231, 768, %s9, [#allocation3], 128, 128, 8
    $region41: #{tpu_custom_call.1} parent=1 // pred_fallthru
      _
    // Predicated region
    $region42: #{tpu_custom_call.1} parent=1 // pred_check
      _
    $region43: #{tpu_custom_call.1} parent=1 // pred_check_branch
      %1238 = sbr.rel (0) target = $region45
    $region44: #{tpu_custom_call.1} parent=1 // pred_region
      %1239 = dma.done [#allocation3], 768
    $region45: #{tpu_custom_call.1} parent=1 // pred_fallthru
      _
    %1240 = vsyncpa [#allocation3], 1

</llo_original>
